<compile_context>
chip_gen: v5e
topology: v5e:2x2
jax: 0.10.0
libtpu: 0.0.40
codegen_flags: <defaults>
</compile_context>

<pallas_src>
import jax
import jax.numpy as jnp
from jax.experimental import pallas as pl
from jax.experimental.pallas import tpu as pltpu

LANE = 128
MAX_TILE_ROWS = 1024      # (1024, 128) f32 tile = 512 KiB
NUM_CHUNKS = 2            # leading "parallel" grid axis (both TCs on v7x)
_PAD_LOGIT = -1e4         # max(x,0) - x*0 + log1p(exp(-|x|)) == 0 exactly (exp underflows)


def _round_up(a: int, m: int) -> int:
    return ((a + m - 1) // m) * m


def _bce_kernel(x_ref, y_ref, out_ref):
    """Accumulates stable BCE-with-logits elementwise into the chunk-resident
    output block (same block for every step of the inner reduction axis)."""
    i = pl.program_id(1)

    @pl.when(i == 0)
    def _():
        out_ref[...] = jnp.zeros_like(out_ref)

    x = x_ref[...].astype(jnp.float32)
    y = y_ref[...].astype(jnp.float32)
    # Numerically-stable BCEWithLogits (same formulation PyTorch uses):
    #   max(x, 0) - x*y + log(1 + exp(-|x|))
    out_ref[...] += jnp.maximum(x, 0.0) - x * y + jnp.log1p(jnp.exp(-jnp.abs(x)))


def bce_with_logits_mean(outputs: jax.Array, targets: jax.Array) -> jax.Array:
    """Mean BCE-with-logits over all elements, computed in a Pallas kernel."""
    n = outputs.size
    x = outputs.reshape(-1)
    y = targets.reshape(-1)

    # Tiling: rows of 128 lanes, rounded up so every chunk is a whole number of
    # tiles.  Rows are rounded to a multiple of 32 so any input dtype's sublane
    # packing constraint is satisfied.
    rows = _round_up(pl.cdiv(n, LANE), 32)
    chunk_rows = _round_up(pl.cdiv(rows, NUM_CHUNKS), 32)
    tile_rows = min(MAX_TILE_ROWS, chunk_rows)
    steps = pl.cdiv(chunk_rows, tile_rows)
    chunk_rows = steps * tile_rows
    padded_rows = NUM_CHUNKS * chunk_rows

    pad = padded_rows * LANE - n
    if pad:
        # Neutral padding: x=-1e4, y=0 gives a loss of exactly 0 (no mask needed).
        x = jnp.pad(x, (0, pad), constant_values=_PAD_LOGIT)
        y = jnp.pad(y, (0, pad), constant_values=0)
    x = x.reshape(padded_rows, LANE)
    y = y.reshape(padded_rows, LANE)

    in_spec = pl.BlockSpec((tile_rows, LANE), lambda p, i: (p * steps + i, 0))
    # Output block index depends only on p => resident accumulator across the
    # inner (reduction) grid axis; each chunk owns a distinct block.
    out_spec = pl.BlockSpec((tile_rows, LANE), lambda p, i: (p, 0))

    partial = pl.pallas_call(
        _bce_kernel,
        out_shape=jax.ShapeDtypeStruct((NUM_CHUNKS * tile_rows, LANE), jnp.float32),
        grid_spec=pltpu.PrefetchScalarGridSpec(
            num_scalar_prefetch=0,
            grid=(NUM_CHUNKS, steps),
            in_specs=[in_spec, in_spec],
            out_specs=out_spec,
        ),
        compiler_params=pltpu.CompilerParams(
            dimension_semantics=("parallel", "arbitrary")),
    )(x, y)

    # Tiny final reduction + mean scaling (O(NUM_CHUNKS * tile_rows * 128) elems).
    return jnp.sum(partial) * (1.0 / float(n))


# ----- Lovasz hinge (plain JAX glue; only used when lovasz=True) -------------
# TODO(synk): torch.sort / gather of the Lovasz path has no clean Pallas TPU
# equivalent (data-dependent permutation); it stays in plain JAX.
def _lovasz_hinge_flat(logits: jax.Array, labels: jax.Array) -> jax.Array:
    logits = logits.reshape(-1).astype(jnp.float32)
    labels = labels.reshape(-1).astype(jnp.float32)
    signs = 2.0 * labels - 1.0
    errors = 1.0 - logits * signs
    perm = jnp.argsort(-errors)          # descending (tie order may differ from torch)
    errors_sorted = errors[perm]
    gt_sorted = labels[perm]
    gts = gt_sorted.sum()
    intersection = gts - jnp.cumsum(gt_sorted)
    union = gts + jnp.cumsum(1.0 - gt_sorted)
    jaccard = 1.0 - intersection / union
    grad = jnp.concatenate([jaccard[:1], jaccard[1:] - jaccard[:-1]])
    return jnp.dot(jax.nn.relu(errors_sorted), grad)


def _lovasz_hinge(logits: jax.Array, labels: jax.Array) -> jax.Array:
    # per_image=True semantics: mean over the batch dimension.
    per_img = jax.vmap(_lovasz_hinge_flat)(logits, labels)
    return jnp.mean(per_img)


# ----- Module equivalent ------------------------------------------------------
class BinaryLossFunc:
    """JAX/Pallas equivalent of Binary_LossFunc.forward."""

    def __init__(self, lovasz: bool = False):
        self.lovasz = lovasz

    def __call__(self, outputs: jax.Array, targets: jax.Array) -> jax.Array:
        loss = bce_with_logits_mean(outputs, targets)
        if self.lovasz:
            # squeeze() like torch: drop size-1 dims (e.g. channel dim C=1)
            o = jnp.squeeze(outputs)
            t = jnp.squeeze(targets.astype(jnp.float32))
            loss = loss + _lovasz_hinge(o, t)
        return loss


def _bce_ref(outputs, targets):
    x = outputs.astype(jnp.float32)
    y = targets.astype(jnp.float32)
    return jnp.mean(jnp.maximum(x, 0.0) - x * y + jnp.log1p(jnp.exp(-jnp.abs(x))))


if __name__ == "__main__":
    key = jax.random.PRNGKey(0)
    k1, k2, k3, k4 = jax.random.split(key, 4)

    # --- primary test: small NCHW, matching the PyTorch convention ---
    B, C, H, W = 2, 4, 16, 16
    outputs = jax.random.normal(k1, (B, C, H, W), dtype=jnp.float32)
    targets = (jax.random.uniform(k2, (B, C, H, W)) > 0.5).astype(jnp.float32)

    loss_fn = BinaryLossFunc(lovasz=False)
    loss = loss_fn(outputs, targets)
    jax.block_until_ready(loss)
    ref = _bce_ref(outputs, targets)
    assert jnp.allclose(loss, ref, atol=1e-5, rtol=1e-5), (loss, ref)

    # --- secondary test: bigger shape exercising padding + multi-step grid ---
    outputs2 = jax.random.normal(k3, (2, 4, 192, 192), dtype=jnp.float32)
    targets2 = (jax.random.uniform(k4, (2, 4, 192, 192)) > 0.5).astype(jnp.float32)
    loss2 = bce_with_logits_mean(outputs2, targets2)
    jax.block_until_ready(loss2)
    ref2 = _bce_ref(outputs2, targets2)
    assert jnp.allclose(loss2, ref2, atol=1e-5, rtol=1e-4), (loss2, ref2)

    # --- lovasz=True path (plain-JAX Lovasz on top of the Pallas BCE) ---
    out_l = jax.random.normal(k1, (2, 1, 16, 16), dtype=jnp.float32)
    tgt_l = (jax.random.uniform(k2, (2, 1, 16, 16)) > 0.5).astype(jnp.float32)
    loss_l = BinaryLossFunc(lovasz=True)(out_l, tgt_l)
    jax.block_until_ready(loss_l)
    assert bool(jnp.isfinite(loss_l))

    print("KERNEL_OK")
</pallas_src>

<mosaic_0001>
module attributes {stable_mosaic.version = 11 : i64} {
  func.func @_bce_kernel(%arg0: i32, %arg1: i32, %arg2: memref<32x128xf32, #tpu.memory_space<vmem>>, %arg3: memref<32x128xf32, #tpu.memory_space<vmem>>, %arg4: memref<32x128xf32, #tpu.memory_space<vmem>>) attributes {dimension_semantics = [#tpu.dimension_semantics<parallel>, #tpu.dimension_semantics<arbitrary>], iteration_bounds = array<i64: 2, 1>, scalar_prefetch = 0 : i64, scratch_operands = 0 : i64, tpu.core_type = #tpu.core_type<tc>, window_params = [{transform_indices = @transform_0, window_bounds = array<i64: 32, 128>}, {transform_indices = @transform_1, window_bounds = array<i64: 32, 128>}, {transform_indices = @transform_2, window_bounds = array<i64: 32, 128>}]} {
    %c0_i32 = arith.constant 0 : i32
    %0 = arith.cmpi eq, %arg1, %c0_i32 : i32
    %1 = arith.extui %0 : i1 to i32
    %c0_i32_0 = arith.constant 0 : i32
    %2 = arith.cmpi ne, %1, %c0_i32_0 : i32
    scf.if %2 {
      %cst_9 = arith.constant 0.000000e+00 : f32
      %18 = vector.broadcast %cst_9 : f32 to vector<32x128xf32>
      %c0_10 = arith.constant 0 : index
      %c0_11 = arith.constant 0 : index
      %19 = vector.load %arg4[%c0_10, %c0_11] : memref<32x128xf32, #tpu.memory_space<vmem>>, vector<32x128xf32>
      tpu.vector_store %arg4[%c0_10, %c0_11], %18 {strides = array<i32>} : memref<32x128xf32, #tpu.memory_space<vmem>>, vector<32x128xf32>,
    } else {
    }
    %c0 = arith.constant 0 : index
    %c0_1 = arith.constant 0 : index
    %3 = vector.load %arg2[%c0, %c0_1] : memref<32x128xf32, #tpu.memory_space<vmem>>, vector<32x128xf32>
    %c0_2 = arith.constant 0 : index
    %c0_3 = arith.constant 0 : index
    %4 = vector.load %arg3[%c0_2, %c0_3] : memref<32x128xf32, #tpu.memory_space<vmem>>, vector<32x128xf32>
    %c0_4 = arith.constant 0 : index
    %c0_5 = arith.constant 0 : index
    %5 = vector.load %arg4[%c0_4, %c0_5] : memref<32x128xf32, #tpu.memory_space<vmem>>, vector<32x128xf32>
    %cst = arith.constant 0.000000e+00 : f32
    %6 = vector.broadcast %cst : f32 to vector<32x128xf32>
    %7 = arith.maximumf %3, %6 : vector<32x128xf32>
    %8 = arith.mulf %3, %4 : vector<32x128xf32>
    %9 = arith.subf %7, %8 : vector<32x128xf32>
    %10 = math.absf %3 : vector<32x128xf32>
    %cst_6 = arith.constant 0.000000e+00 : f32
    %11 = vector.broadcast %cst_6 : f32 to vector<32x128xf32>
    %12 = arith.subf %11, %10 : vector<32x128xf32>
    %13 = math.exp %12 : vector<32x128xf32>
    %14 = math.log1p %13 : vector<32x128xf32>
    %15 = arith.addf %9, %14 : vector<32x128xf32>
    %16 = arith.addf %5, %15 : vector<32x128xf32>
    %c0_7 = arith.constant 0 : index
    %c0_8 = arith.constant 0 : index
    %17 = vector.load %arg4[%c0_7, %c0_8] : memref<32x128xf32, #tpu.memory_space<vmem>>, vector<32x128xf32>
    tpu.vector_store %arg4[%c0_7, %c0_8], %16 {strides = array<i32>} : memref<32x128xf32, #tpu.memory_space<vmem>>, vector<32x128xf32>,
    return
  }
  func.func @transform_0(%arg0: i32, %arg1: i32) -> (i32, i32) {
    %c1_i32 = arith.constant 1 : i32
    %0 = arith.muli %arg0, %c1_i32 : i32
    %1 = arith.addi %0, %arg1 : i32
    %c0_i32 = arith.constant 0 : i32
    %c0_i32_0 = arith.constant 0 : i32
    return %1, %c0_i32 : i32, i32
  }
  func.func @transform_1(%arg0: i32, %arg1: i32) -> (i32, i32) {
    %c1_i32 = arith.constant 1 : i32
    %0 = arith.muli %arg0, %c1_i32 : i32
    %1 = arith.addi %0, %arg1 : i32
    %c0_i32 = arith.constant 0 : i32
    %c0_i32_0 = arith.constant 0 : i32
    return %1, %c0_i32 : i32, i32
  }
  func.func @transform_2(%arg0: i32, %arg1: i32) -> (i32, i32) {
    %c0_i32 = arith.constant 0 : i32
    %c0_i32_0 = arith.constant 0 : i32
    return %arg0, %c0_i32 : i32, i32
  }
}

</mosaic_0001>

<llo_original>
// kernel: tpu_custom_call.1
$region0: #{tpu_custom_call.1}
  #allocation0 [shape = 'u32[]', space=smem, size = 0x4, offset = 0x4, fixed_abs, tag = 'smem constant byte address 0x4 - core index']
  #allocation1 [shape = 'u32[72,128]{1,0:T(1,128)}', space=vmem, size = 0x9000, scoped, tag = 'internal scratch']
  %s0 = inlined_call_operand.hbm [shape: f32[64,128], index: 0, kind: input, shape index: {}]
  %s1 = inlined_call_operand.hbm [shape: f32[64,128], index: 1, kind: input, shape index: {}]
  %s2 = inlined_call_operand.hbm [shape: f32[64,128], index: 2, kind: output, shape index: {}]
  %s3 = sld [smem:[#allocation0]]
  $region53: #{tpu_custom_call.1} parent=0
    _
  %s5 = ssub.s32 1, %s3
  %s6 = scalar_select 0, %s5, %s3
  $region1: #{tpu_custom_call.1} parent=0
    #allocation2 [shape = 'u8[32768]{0}', space=vmem, size = 0x8000, scoped, tag = 'input window, operand 0']
    #allocation3 [shape = 's32[2]{0}', space=sflag, size = 0x8, scoped, tag = 'scoped memory for tpu_custom_call.1']
    #allocation4 [shape = 's32[2]{0}', space=sflag, size = 0x8, scoped, tag = 'scoped memory for tpu_custom_call.1']
    #allocation5 [shape = 'u8[32768]{0}', space=vmem, size = 0x8000, scoped, tag = 'input window, operand 1']
    #allocation6 [shape = 's32[2]{0}', space=sflag, size = 0x8, scoped, tag = 'scoped memory for tpu_custom_call.1']
    #allocation7 [shape = 'u8[32768]{0}', space=vmem, size = 0x8000, scoped, tag = 'output window, operand 0']
    %7 = vsyncpa [#allocation3], 0
    %s8 = scalar_lea.sflag [#allocation3], 1
    %9 = vsyncpa %s8, 0
    %10 = vsyncpa [#allocation6], 0
    %s11 = scalar_lea.sflag [#allocation6], 1
    %12 = vsyncpa %s11, 0
    %13 = vsyncpa [#allocation4], 0
    %s14 = scalar_lea.sflag [#allocation4], 1
    %15 = vsyncpa %s14, 0
    loop: start=0, step=1, limit=4
    $region2: #{tpu_custom_call.1} parent=1 // loop_pre_header
      _
    $region3: #{tpu_custom_call.1} parent=1 // loop_header
      %s17 = sphi 0, %s21
      %p18 = scmp.ge.s32.totalorder %s17, 4
      %s24 = sphi 0, %s36
      %s25 = sphi 0, %s32
      %s26 = sphi 0, %s24
      %s27 = sphi 0, %s25
      %s28 = sphi 0, %s26
      %s29 = sphi 0, %s27
      %s41 = sphi 0, %s43
      %s44 = sphi 0, %s41
      %s45 = sphi 0, %s44
      %s61 = sphi 0, %s45
      %s69 = sphi 0, %s71
      %s72 = sphi 0, %s69
      %s73 = sphi 0, %s72
      %s89 = sphi 0, %s73
      %s95 = sphi 0, %s97
      %s98 = sphi 0, %s95
      %s99 = sphi 0, %s98
      %s115 = sphi 0, %s99
    $region4: #{tpu_custom_call.1} parent=1 // loop_header_branch
      %20 = sbr.rel (%p18) target = $region8
    $region5: #{tpu_custom_call.1} parent=1 // loop_body
      %s22 = ssub.s32 %s17, 1
      %s23 = ssub.s32 %s17, 2
      %s30 = sadd.s32 1, %s25
      %p31 = scmp.ge.s32.totalorder %s30, 1
      %s32 = scalar_select %p31, 0, %s30
      %s33 = sadd.s32 1, %s24
      %s34 = scalar_select %p31, %s33, %s24
      %p35 = scmp.ge.s32.totalorder %s34, 2
      %s36 = scalar_select %p35, 0, %s34
      %s37 = sadd.s32 %s24, %s25
      %s38 = sadd.s32 %s36, %s32
      %s39 = ssub.s32 %s37, %s38
      %p40 = scmp.eq.s32.totalorder %s39, 0
      %s42 = sadd.s32 %s41, 1
      %s43 = scalar_select %p40, %s41, %s42
      %p46 = pneg %p40
      %p47 = scmp.eq.s32.totalorder %s17, 1
      %p48 = por %p46, %p47
      %p49 = scmp.ne.s32.totalorder %s41, %s44
      %p50 = scmp.eq.s32.totalorder %s17, 0
      %p51 = por %p49, %p50
      %p52 = scmp.ne.s32.totalorder %s41, %s44
      %p53 = scmp.eq.s32.totalorder %s22, 1
      %p54 = por %p52, %p53
      %p55 = scmp.ne.s32.totalorder %s44, %s45
      %p56 = scmp.eq.s32.totalorder %s22, 0
      %p57 = por %p55, %p56
      %p58 = scmp.ne.s32.totalorder %s44, %s45
      %p59 = scmp.eq.s32.totalorder %s23, 1
      %p60 = por %p58, %p59
      %p62 = scmp.ne.s32.totalorder %s45, %s61
      %p63 = scmp.eq.s32.totalorder %s23, 0
      %p64 = por %p62, %p63
      %s65 = sadd.s32 %s24, %s25
      %s66 = sadd.s32 %s36, %s32
      %s67 = ssub.s32 %s65, %s66
      %p68 = scmp.eq.s32.totalorder %s67, 0
      %s70 = sadd.s32 %s69, 1
      %s71 = scalar_select %p68, %s69, %s70
      %p74 = pneg %p68
      %p75 = scmp.eq.s32.totalorder %s17, 1
      %p76 = por %p74, %p75
      %p77 = scmp.ne.s32.totalorder %s69, %s72
      %p78 = scmp.eq.s32.totalorder %s17, 0
      %p79 = por %p77, %p78
      %p80 = scmp.ne.s32.totalorder %s69, %s72
      %p81 = scmp.eq.s32.totalorder %s22, 1
      %p82 = por %p80, %p81
      %p83 = scmp.ne.s32.totalorder %s72, %s73
      %p84 = scmp.eq.s32.totalorder %s22, 0
      %p85 = por %p83, %p84
      %p86 = scmp.ne.s32.totalorder %s72, %s73
      %p87 = scmp.eq.s32.totalorder %s23, 1
      %p88 = por %p86, %p87
      %p90 = scmp.ne.s32.totalorder %s73, %s89
      %p91 = scmp.eq.s32.totalorder %s23, 0
      %p92 = por %p90, %p91
      %s93 = ssub.s32 %s24, %s36
      %p94 = scmp.eq.s32.totalorder %s93, 0
      %s96 = sadd.s32 %s95, 1
      %s97 = scalar_select %p94, %s95, %s96
      %p100 = pneg %p94
      %p101 = scmp.eq.s32.totalorder %s17, 1
      %p102 = por %p100, %p101
      %p103 = scmp.ne.s32.totalorder %s95, %s98
      %p104 = scmp.eq.s32.totalorder %s17, 0
      %p105 = por %p103, %p104
      %p106 = scmp.ne.s32.totalorder %s95, %s98
      %p107 = scmp.eq.s32.totalorder %s22, 1
      %p108 = por %p106, %p107
      %p109 = scmp.ne.s32.totalorder %s98, %s99
      %p110 = scmp.eq.s32.totalorder %s22, 0
      %p111 = por %p109, %p110
      %p112 = scmp.ne.s32.totalorder %s98, %s99
      %p113 = scmp.eq.s32.totalorder %s23, 1
      %p114 = por %p112, %p113
      %p116 = scmp.ne.s32.totalorder %s99, %s115
      %p117 = scmp.eq.s32.totalorder %s23, 0
      %p118 = por %p116, %p117
      %p119 = scmp.le.s32.totalorder 1, %s17
      %p120 = scmp.lt.s32.totalorder %s17, 3
      %p121 = pnand %p119, %p120
      %p122 = pneg %p121
      // Predicated region
      $region9: #{tpu_custom_call.1} parent=5 // pred_check
        _
      $region10: #{tpu_custom_call.1} parent=5 // pred_check_branch
        %124 = sbr.rel (%p121) target = $region12
      $region11: #{tpu_custom_call.1} parent=5 // pred_region
        %s125 = ssub.s32 %s17, 1
      $region12: #{tpu_custom_call.1} parent=5 // pred_fallthru
        _
      %p126 = scmp.lt.s32.totalorder %s17, 2
      // Predicated region
      $region13: #{tpu_custom_call.1} parent=5 // pred_check
        %p127 = pneg %p126
      $region14: #{tpu_custom_call.1} parent=5 // pred_check_branch
        %129 = sbr.rel (%p127) target = $region16
      $region15: #{tpu_custom_call.1} parent=5 // pred_region
        // Predicated region
        $region17: #{tpu_custom_call.1} parent=15 // pred_check
          %p130 = pneg %p51
        $region18: #{tpu_custom_call.1} parent=15 // pred_check_branch
          %132 = sbr.rel (%p130) target = $region20
        $region19: #{tpu_custom_call.1} parent=15 // pred_region
          %s133 = sand.u32 %s41, 1
          %s134 = scalar_lea.sflag [#allocation3], %s133
          %s135 = sand.u32 %s41, 1
          %s136 = smul.addr %s135, 32
          %s137 = scalar_lea.vmem [#allocation2], %s136
          %s138 = sadd.s32 %s24, %s25
          %s139 = smul.u32 4, %s138
          %141 = vsyncadd %s134, 0
          %s142 = smul.addr %s139, 8
          %s143 = scalar_lea.hbm %s0, %s142
          %s144 = sshll.u32 %s143, 4
          %s145 = int_to_ptr.hbm [resolvable:$true] %s144
          %s146 = sshll.u32 %s137, 4
          %s147 = int_to_ptr.vmem [resolvable:$true] %s146
          %152 = dma.hbm_to_vmem [thread:$0]  %s145, 512, %s147, %s134, 128, 128, 8
        $region20: #{tpu_custom_call.1} parent=15 // pred_fallthru
          _
        // Predicated region
        $region21: #{tpu_custom_call.1} parent=15 // pred_check
          %p153 = pneg %p79
        $region22: #{tpu_custom_call.1} parent=15 // pred_check_branch
          %155 = sbr.rel (%p153) target = $region24
        $region23: #{tpu_custom_call.1} parent=15 // pred_region
          %s156 = sand.u32 %s69, 1
          %s157 = scalar_lea.sflag [#allocation6], %s156
          %s158 = sand.u32 %s69, 1
          %s159 = smul.addr %s158, 32
          %s160 = scalar_lea.vmem [#allocation5], %s159
          %s161 = sadd.s32 %s24, %s25
          %s162 = smul.u32 4, %s161
          %164 = vsyncadd %s157, 0
          %s165 = smul.addr %s162, 8
          %s166 = scalar_lea.hbm %s1, %s165
          %s167 = sshll.u32 %s166, 4
          %s168 = int_to_ptr.hbm [resolvable:$true] %s167
          %s169 = sshll.u32 %s160, 4
          %s170 = int_to_ptr.vmem [resolvable:$true] %s169
          %175 = dma.hbm_to_vmem [thread:$0]  %s168, 512, %s170, %s157, 128, 128, 8
        $region24: #{tpu_custom_call.1} parent=15 // pred_fallthru
          _
      $region16: #{tpu_custom_call.1} parent=5 // pred_fallthru
        _
      %p176 = scmp.le.s32.totalorder 1, %s17
      %p177 = scmp.lt.s32.totalorder %s17, 3
      %p178 = pnand %p176, %p177
      %p179 = pneg %p178
      // Predicated region
      $region25: #{tpu_custom_call.1} parent=5 // pred_check
        _
      $region26: #{tpu_custom_call.1} parent=5 // pred_check_branch
        %181 = sbr.rel (%p178) target = $region28
      $region27: #{tpu_custom_call.1} parent=5 // pred_region
        %s182 = ssub.s32 %s17, 1
        %s183 = sand.u32 %s44, 1
        %s184 = scalar_lea.sflag [#allocation3], %s183
        %s185 = sand.u32 %s44, 1
        %s186 = smul.addr %s185, 32
        %s187 = scalar_lea.vmem [#allocation2], %s186
        // Predicated region
        $region29: #{tpu_custom_call.1} parent=27 // pred_check
          %p188 = pneg %p57
        $region30: #{tpu_custom_call.1} parent=27 // pred_check_branch
          %190 = sbr.rel (%p188) target = $region32
        $region31: #{tpu_custom_call.1} parent=27 // pred_region
          %192 = dma.done %s184, 512
        $region32: #{tpu_custom_call.1} parent=27 // pred_fallthru
          _
        %s193 = sand.u32 %s72, 1
        %s194 = scalar_lea.sflag [#allocation6], %s193
        %s195 = sand.u32 %s72, 1
        %s196 = smul.addr %s195, 32
        %s197 = scalar_lea.vmem [#allocation5], %s196
        // Predicated region
        $region33: #{tpu_custom_call.1} parent=27 // pred_check
          %p198 = pneg %p85
        $region34: #{tpu_custom_call.1} parent=27 // pred_check_branch
          %200 = sbr.rel (%p198) target = $region36
        $region35: #{tpu_custom_call.1} parent=27 // pred_region
          %202 = dma.done %s194, 512
        $region36: #{tpu_custom_call.1} parent=27 // pred_fallthru
          _
        %s203 = sand.u32 %s44, 1
        %s204 = scalar_lea.sflag [#allocation3], %s203
        %s205 = sand.u32 %s44, 1
        %s206 = smul.addr %s205, 32
        %s207 = scalar_lea.vmem [#allocation2], %s206
        %p208 = pneg %p57
        %p209 = pneg %p54
        %s210 = sand.u32 %s72, 1
        %s211 = scalar_lea.sflag [#allocation6], %s210
        %s212 = sand.u32 %s72, 1
        %s213 = smul.addr %s212, 32
        %s214 = scalar_lea.vmem [#allocation5], %s213
        %p215 = pneg %p85
        %p216 = pneg %p82
        %p217 = pneg %p111
        %p218 = pneg %p108
        %s219 = sand.u32 %s98, 1
        %s220 = scalar_lea.sflag [#allocation4], %s219
        %s221 = sand.u32 %s98, 1
        %s222 = smul.addr %s221, 32
        %s223 = scalar_lea.vmem [#allocation7], %s222
        %s224 = sadd.s32 %s26, %s27
        %s225 = smul.u32 4, %s224
        %s226 = sadd.s32 %s26, %s27
        %s227 = smul.u32 4, %s226
        %s228 = smul.u32 4, %s26
        %p229 = scmp.eq.s32.totalorder %s27, 0
        // Predicated region
        $region37: #{tpu_custom_call.1} parent=27 // pred_check
          %p230 = pneg %p229
        $region38: #{tpu_custom_call.1} parent=27 // pred_check_branch
          %232 = sbr.rel (%p230) target = $region40
        $region39: #{tpu_custom_call.1} parent=27 // pred_region
          %233 = vst [vmem:[%s223] sm:$0xff] 0.0
          %234 = vst [vmem:[%s223 + $0x8] sm:$0xff] 0.0
          %235 = vst [vmem:[%s223 + $0x10] sm:$0xff] 0.0
          %236 = vst [vmem:[%s223 + $0x18] sm:$0xff] 0.0
        $region40: #{tpu_custom_call.1} parent=27 // pred_fallthru
          _
        %v237 = vld [vmem:[%s187] sm:$0xff]
        %v238 = vld [vmem:[%s187 + $0x8] sm:$0xff]
        %v239 = vld [vmem:[%s187 + $0x10] sm:$0xff]
        %v240 = vld [vmem:[%s187 + $0x18] sm:$0xff]
        %v241 = vld [vmem:[%s197] sm:$0xff]
        %v242 = vld [vmem:[%s197 + $0x8] sm:$0xff]
        %v243 = vld [vmem:[%s197 + $0x10] sm:$0xff]
        %v244 = vld [vmem:[%s197 + $0x18] sm:$0xff]
        %v245 = vld [vmem:[%s223] sm:$0xff]
        %v246 = vld [vmem:[%s223 + $0x8] sm:$0xff]
        %v247 = vld [vmem:[%s223 + $0x10] sm:$0xff]
        %v248 = vld [vmem:[%s223 + $0x18] sm:$0xff]
        %v249 = vmax.f32 %v237, 0.0
        %v250 = vmax.f32 %v238, 0.0
        %v251 = vmax.f32 %v239, 0.0
        %v252 = vmax.f32 %v240, 0.0
        %v253 = vmul.f32 %v237, %v241
        %v254 = vmul.f32 %v238, %v242
        %v255 = vmul.f32 %v239, %v243
        %v256 = vmul.f32 %v240, %v244
        %v257 = vsub.f32 %v249, %v253
        %v258 = vsub.f32 %v250, %v254
        %v259 = vsub.f32 %v251, %v255
        %v260 = vsub.f32 %v252, %v256
        %v261 = vand.u32 2147483647, %v237
        %v262 = vand.u32 2147483647, %v238
        %v263 = vand.u32 2147483647, %v239
        %v264 = vand.u32 2147483647, %v240
        %v265 = vsub.f32 0.0, %v261
        %v266 = vsub.f32 0.0, %v262
        %v267 = vsub.f32 0.0, %v263
        %v268 = vsub.f32 0.0, %v264
        %v269 = vmul.f32 %v265, 1.442695
        %v270 = vpow.pop %v269
        %v271 = vmul.f32 %v266, 1.442695
        %v272 = vpow.pop %v271
        %v273 = vmul.f32 %v267, 1.442695
        %v274 = vpow.pop %v273
        %v275 = vmul.f32 %v268, 1.442695
        %v276 = vpow.pop %v275
        %v277 = vadd.f32 %v270, 1.0
        %v278 = vlog2.pop %v277
        %v279 = vmul.f32 %v278, 0.6931472
        %v280 = vmul.f32 -0.5, %v270
        %v281 = vadd.f32 %v280, 1.0
        %v282 = vmul.f32 %v281, %v270
        %v283 = vand.u32 2147483647, %v270
        %vm284 = vcmp.lt.f32.partialorder %v283, 0.0004427343
        %v285 = vsel %vm284, %v282, %v279
        %v286 = vadd.f32 %v272, 1.0
        %v287 = vlog2.pop %v286
        %v288 = vmul.f32 %v287, 0.6931472
        %v289 = vmul.f32 -0.5, %v272
        %v290 = vadd.f32 %v289, 1.0
        %v291 = vmul.f32 %v290, %v272
        %v292 = vand.u32 2147483647, %v272
        %vm293 = vcmp.lt.f32.partialorder %v292, 0.0004427343
        %v294 = vsel %vm293, %v291, %v288
        %v295 = vadd.f32 %v274, 1.0
        %v296 = vlog2.pop %v295
        %v297 = vmul.f32 %v296, 0.6931472
        %v298 = vmul.f32 -0.5, %v274
        %v299 = vadd.f32 %v298, 1.0
        %v300 = vmul.f32 %v299, %v274
        %v301 = vand.u32 2147483647, %v274
        %vm302 = vcmp.lt.f32.partialorder %v301, 0.0004427343
        %v303 = vsel %vm302, %v300, %v297
        %v304 = vadd.f32 %v276, 1.0
        %v305 = vlog2.pop %v304
        %v306 = vmul.f32 %v305, 0.6931472
        %v307 = vmul.f32 -0.5, %v276
        %v308 = vadd.f32 %v307, 1.0
        %v309 = vmul.f32 %v308, %v276
        %v310 = vand.u32 2147483647, %v276
        %vm311 = vcmp.lt.f32.partialorder %v310, 0.0004427343
        %v312 = vsel %vm311, %v309, %v306
        %v313 = vadd.f32 %v257, %v285
        %v314 = vadd.f32 %v258, %v294
        %v315 = vadd.f32 %v259, %v303
        %v316 = vadd.f32 %v260, %v312
        %v317 = vadd.f32 %v245, %v313
        %v318 = vadd.f32 %v246, %v314
        %v319 = vadd.f32 %v247, %v315
        %v320 = vadd.f32 %v248, %v316
        %321 = vst [vmem:[%s223] sm:$0xff] %v317
        %322 = vst [vmem:[%s223 + $0x8] sm:$0xff] %v318
        %323 = vst [vmem:[%s223 + $0x10] sm:$0xff] %v319
        %324 = vst [vmem:[%s223 + $0x18] sm:$0xff] %v320
        %s325 = sand.u32 %s98, 1
        %s326 = scalar_lea.sflag [#allocation4], %s325
        %s327 = sand.u32 %s98, 1
        %s328 = smul.addr %s327, 32
        %s329 = scalar_lea.vmem [#allocation7], %s328
        // Predicated region
        $region41: #{tpu_custom_call.1} parent=27 // pred_check
          %p330 = pneg %p108
        $region42: #{tpu_custom_call.1} parent=27 // pred_check_branch
          %332 = sbr.rel (%p330) target = $region44
        $region43: #{tpu_custom_call.1} parent=27 // pred_region
          %s333 = smul.u32 4, %s26
          %335 = vsyncadd %s326, 0
          %s336 = smul.addr %s333, 8
          %s337 = scalar_lea.hbm %s2, %s336
          %s338 = sshll.u32 %s329, 4
          %s339 = int_to_ptr.vmem [resolvable:$true] %s338
          %s340 = sshll.u32 %s337, 4
          %s341 = int_to_ptr.hbm [resolvable:$true] %s340
          %346 = dma.vmem_to_hbm [thread:$0]  %s339, 512, %s341, %s326, 128, 128, 8
        $region44: #{tpu_custom_call.1} parent=27 // pred_fallthru
          _
      $region28: #{tpu_custom_call.1} parent=5 // pred_fallthru
        _
      %p347 = scmp.le.s32.totalorder 2, %s17
      // Predicated region
      $region45: #{tpu_custom_call.1} parent=5 // pred_check
        %p348 = pneg %p347
      $region46: #{tpu_custom_call.1} parent=5 // pred_check_branch
        %350 = sbr.rel (%p348) target = $region48
      $region47: #{tpu_custom_call.1} parent=5 // pred_region
        %s351 = ssub.s32 %s17, 2
        // Predicated region
        $region49: #{tpu_custom_call.1} parent=47 // pred_check
          %p352 = pneg %p114
        $region50: #{tpu_custom_call.1} parent=47 // pred_check_branch
          %354 = sbr.rel (%p352) target = $region52
        $region51: #{tpu_custom_call.1} parent=47 // pred_region
          %s355 = sand.u32 %s99, 1
          %s356 = scalar_lea.sflag [#allocation4], %s355
          %s357 = sand.u32 %s99, 1
          %s358 = smul.addr %s357, 32
          %s359 = scalar_lea.vmem [#allocation7], %s358
          %361 = dma.done %s356, 512
        $region52: #{tpu_custom_call.1} parent=47 // pred_fallthru
          _
      $region48: #{tpu_custom_call.1} parent=5 // pred_fallthru
        _
    $region6: #{tpu_custom_call.1} parent=1 // loop_footer
      %s21 = sadd.s32 1, %s17
    $region7: #{tpu_custom_call.1} parent=1 // loop_footer_branch
      %16 = sbr.rel target = $region3
    $region8: #{tpu_custom_call.1} parent=1 // loop_exit
      _
    %362 = vsyncpa [#allocation3], 1
    %s363 = scalar_lea.sflag [#allocation3], 1
    %364 = vsyncpa %s363, 1
    %365 = vsyncpa [#allocation6], 1
    %s366 = scalar_lea.sflag [#allocation6], 1
    %367 = vsyncpa %s366, 1
    %368 = vsyncpa [#allocation4], 1
    %s369 = scalar_lea.sflag [#allocation4], 1
    %370 = vsyncpa %s369, 1

</llo_original>
